<compile_context>
chip_gen: v7x
topology: tpu7x:2x2x1
jax: 0.10.0
libtpu: 0.0.40
codegen_flags: <defaults>
</compile_context>

<pallas_src>
import jax
import jax.numpy as jnp
from jax.experimental import pallas as pl
from jax.experimental.pallas import tpu as pltpu

NCLS_PAD = 128          # padded class dimension (lane-dense output)
NEG_LARGE = -1.0e9      # finite "minus infinity" for padded logits


def classnet_kernel(x_ref, w1_ref, b1_ref, w2_ref, b2_ref, out_ref):
    # fc1: in-kernel bf16 cast of x, (tb, IN) @ (IN, HID) -> f32 acc, + b1, relu
    x = x_ref[...].astype(w1_ref.dtype)
    h = jnp.dot(x, w1_ref[...], preferred_element_type=jnp.float32)
    h = jnp.maximum(h + b1_ref[...], 0.0)
    # x.view(-1, hidden_size) is a no-op: h is already (tb, HID).
    # fc2: (tb, HID) @ (HID, 128) -> f32 acc, + padded bias.
    logits = jnp.dot(h.astype(w2_ref.dtype), w2_ref[...],
                     preferred_element_type=jnp.float32) + b2_ref[...]
    # log_softmax along the padded, full-lane-width class axis.  Padded columns
    # are exactly -1e9: never win the max, exp underflows to 0.
    m = jnp.max(logits, axis=-1, keepdims=True)
    z = logits - m
    lse = jnp.log(jnp.sum(jnp.exp(z), axis=-1, keepdims=True))
    out_ref[...] = (z - lse).astype(out_ref.dtype)


# ----------------------------- one-time param prep -----------------------------

def prepare_params(w1_t, b1, w2_t, b2, *, compute_dtype=jnp.bfloat16):
    """One-time cast/pad of parameters.  Call once; reuse across forward calls.

    w1_t: (IN, HID), b1: (1, HID) or (HID,), w2_t: (HID, NCLS), b2: (1, NCLS) or (NCLS,)
    """
    IN, HID = w1_t.shape
    NCLS = w2_t.shape[1]
    w2_pad = jnp.zeros((HID, NCLS_PAD), jnp.float32).at[:, :NCLS].set(
        w2_t.astype(jnp.float32))
    b2_pad = jnp.full((1, NCLS_PAD), NEG_LARGE, jnp.float32).at[:, :NCLS].set(
        b2.reshape(1, NCLS).astype(jnp.float32))
    # TODO(synk): optional v7x-only fp8 quantization of w1 (per-channel scales)
    # for ~2x fc1 MXU rate; needs an accuracy check, so not enabled by default.
    return dict(
        w1=w1_t.astype(compute_dtype),
        b1=b1.reshape(1, HID).astype(jnp.float32),
        w2=w2_pad.astype(compute_dtype),          # bf16 MXU operand
        b2=b2_pad,                                 # stays f32 so -1e9 pad is exact
        num_classes=NCLS,
    )


# ----------------------------- tiling helpers -----------------------------

def _tpu_generation():
    try:
        kind = jax.devices()[0].device_kind.lower()
    except Exception:  # pragma: no cover - CPU interpret etc.
        return None
    if "v5" in kind:
        return 5
    if "v6" in kind:
        return 6
    if "v7" in kind or "7x" in kind:
        return 7
    return None


def _pad_batch(B):
    # Keep small batches as a single sublane-aligned tile; pad large batches to
    # a multiple of 128 so tiles stay (8,128)/MXU-aligned and bounded.
    if B <= 128:
        return max(8, ((B + 7) // 8) * 8)
    return ((B + 127) // 128) * 128


def _pick_tile(b_pad):
    """b_pad is either <=128 (one tile) or a multiple of 128."""
    gen = _tpu_generation()
    if b_pad <= 128:
        return b_pad
    if gen == 5:
        return 128                       # v5e: 4x128^2 MXU, keep VMEM/spills low
    if b_pad % 256 == 0:
        if gen == 7 and b_pad // 256 < 2:
            return 128                   # v7x: keep both TensorCores busy
        return 256                       # v6e/v7x: match the 2x256^2 MXU
    return 128


def _vmem_limit_bytes(tb, IN, HID):
    x_bytes = 2 * tb * IN * 4                 # f32 input, double-buffered
    out_bytes = 2 * tb * NCLS_PAD * 4         # f32 output, double-buffered
    w_bytes = IN * HID * 2 + HID * NCLS_PAD * 2 + HID * 4 + NCLS_PAD * 4  # single-buffered
    tmp_bytes = tb * HID * 4 + tb * HID * 2 + tb * IN * 2  # f32 h, bf16 h, bf16 x
    est = int((x_bytes + out_bytes + w_bytes + tmp_bytes) * 1.5) + (2 << 20)
    return min(max(est, 32 << 20), 64 << 20)  # >=32 MiB headroom, <= v7x physical


# ----------------------------- forward wrapper -----------------------------

def classnet_forward(x, params, *, out_dtype=jnp.float32):
    """x: (B, IN) f32; params from prepare_params.  Returns (B, num_classes) log-probs."""
    B, IN = x.shape
    w1, b1, w2, b2 = params["w1"], params["b1"], params["w2"], params["b2"]
    HID = w1.shape[1]
    NCLS = params["num_classes"]

    b_pad = _pad_batch(B)
    if b_pad != B:
        x = jnp.zeros((b_pad, IN), x.dtype).at[:B].set(x)

    tb = _pick_tile(b_pad)
    grid = (b_pad // tb,)
    const = pl.Buffered(1)   # grid-invariant operands: single buffer

    out_pad = pl.pallas_call(
        classnet_kernel,
        out_shape=jax.ShapeDtypeStruct((b_pad, NCLS_PAD), out_dtype),
        grid_spec=pltpu.PrefetchScalarGridSpec(
            num_scalar_prefetch=0,
            grid=grid,
            in_specs=[
                pl.BlockSpec((tb, IN), lambda i: (i, 0)),          # x tile over batch
                pl.BlockSpec((IN, HID), lambda i: (0, 0), pipeline_mode=const),
                pl.BlockSpec((1, HID), lambda i: (0, 0), pipeline_mode=const),
                pl.BlockSpec((HID, NCLS_PAD), lambda i: (0, 0), pipeline_mode=const),
                pl.BlockSpec((1, NCLS_PAD), lambda i: (0, 0), pipeline_mode=const),
            ],
            out_specs=pl.BlockSpec((tb, NCLS_PAD), lambda i: (i, 0)),
        ),
        compiler_params=pltpu.CompilerParams(
            dimension_semantics=("parallel",),
            vmem_limit_bytes=_vmem_limit_bytes(tb, IN, HID),
        ),
    )(x, w1, b1, w2, b2)

    # Drop padded rows/classes (cheap XLA slice).  Consumers that can take the
    # padded (b_pad, 128) slab directly may skip this.
    return out_pad[:B, :NCLS]


def reference_forward(x, w1_t, b1, w2_t, b2, compute_dtype=jnp.bfloat16):
    # Same bf16-operand / f32-accumulate recipe so the comparison is apples-to-apples.
    h = jnp.dot(x.astype(compute_dtype), w1_t.astype(compute_dtype),
                preferred_element_type=jnp.float32) + b1.reshape(1, -1)
    h = jnp.maximum(h, 0.0)
    logits = jnp.dot(h.astype(compute_dtype), w2_t.astype(compute_dtype),
                     preferred_element_type=jnp.float32) + b2.reshape(1, -1)
    return jax.nn.log_softmax(logits, axis=1)


if __name__ == "__main__":
    # Small shapes consistent with the module (input_size, hidden_size scaled down).
    BATCH = 16
    INPUT_SIZE = 128
    HIDDEN_SIZE = 256
    NUM_CLASSES = 2

    key = jax.random.PRNGKey(0)
    kx, kw1, kb1, kw2, kb2 = jax.random.split(key, 5)

    x = jax.random.normal(kx, (BATCH, INPUT_SIZE), dtype=jnp.float32)

    # PyTorch-Linear-style uniform fan-in init; weights stored pre-transposed
    # as (in_features, out_features) so the MXU computes x @ W directly.
    lim1 = 1.0 / jnp.sqrt(INPUT_SIZE)
    lim2 = 1.0 / jnp.sqrt(HIDDEN_SIZE)
    w1_t = jax.random.uniform(kw1, (INPUT_SIZE, HIDDEN_SIZE), jnp.float32, -lim1, lim1)
    b1 = jax.random.uniform(kb1, (1, HIDDEN_SIZE), jnp.float32, -lim1, lim1)
    w2_t = jax.random.uniform(kw2, (HIDDEN_SIZE, NUM_CLASSES), jnp.float32, -lim2, lim2)
    b2 = jax.random.uniform(kb2, (1, NUM_CLASSES), jnp.float32, -lim2, lim2)

    params = prepare_params(w1_t, b1, w2_t, b2)   # one-time prep (hoisted)

    # Full small batch.
    out = jax.block_until_ready(classnet_forward(x, params))
    ref = reference_forward(x, w1_t, b1, w2_t, b2)
    assert out.shape == (BATCH, NUM_CLASSES)
    assert jnp.allclose(out, ref, atol=5e-3, rtol=5e-3), "mismatch vs JAX reference"
    assert jnp.allclose(jnp.sum(jnp.exp(out), axis=1), 1.0, atol=1e-3), "not normalized"

    # Ragged batch (exercises the batch-padding path).
    out_r = jax.block_until_ready(classnet_forward(x[:10], params))
    ref_r = reference_forward(x[:10], w1_t, b1, w2_t, b2)
    assert out_r.shape == (10, NUM_CLASSES)
    assert jnp.allclose(out_r, ref_r, atol=5e-3, rtol=5e-3), "ragged mismatch"

    print("KERNEL_OK")
</pallas_src>

<mosaic_0001>
module attributes {stable_mosaic.version = 11 : i64} {
  func.func @classnet_kernel(%arg0: i32, %arg1: memref<16x128xf32, #tpu.memory_space<vmem>>, %arg2: memref<128x256xbf16, #tpu.memory_space<vmem>>, %arg3: memref<1x256xf32, #tpu.memory_space<vmem>>, %arg4: memref<256x128xbf16, #tpu.memory_space<vmem>>, %arg5: memref<1x128xf32, #tpu.memory_space<vmem>>, %arg6: memref<16x128xf32, #tpu.memory_space<vmem>>) attributes {dimension_semantics = [#tpu.dimension_semantics<parallel>], iteration_bounds = array<i64: 1>, scalar_prefetch = 0 : i64, scratch_operands = 0 : i64, tpu.core_type = #tpu.core_type<tc>, window_params = [{transform_indices = @transform_0, window_bounds = array<i64: 16, 128>}, {pipeline_mode = #tpu.pipeline_mode<synchronous>, transform_indices = @transform_1, window_bounds = array<i64: 128, 256>}, {pipeline_mode = #tpu.pipeline_mode<synchronous>, transform_indices = @transform_2, window_bounds = array<i64: 1, 256>}, {pipeline_mode = #tpu.pipeline_mode<synchronous>, transform_indices = @transform_3, window_bounds = array<i64: 256, 128>}, {pipeline_mode = #tpu.pipeline_mode<synchronous>, transform_indices = @transform_4, window_bounds = array<i64: 1, 128>}, {transform_indices = @transform_5, window_bounds = array<i64: 16, 128>}]} {
    %c0 = arith.constant 0 : index
    %c0_0 = arith.constant 0 : index
    %0 = vector.load %arg1[%c0, %c0_0] : memref<16x128xf32, #tpu.memory_space<vmem>>, vector<16x128xf32>
    %1 = arith.truncf %0 : vector<16x128xf32> to vector<16x128xbf16>
    %c0_1 = arith.constant 0 : index
    %c0_2 = arith.constant 0 : index
    %2 = vector.load %arg2[%c0_1, %c0_2] : memref<128x256xbf16, #tpu.memory_space<vmem>>, vector<128x256xbf16>
    %cst = arith.constant dense<0.000000e+00> : vector<16x256xf32>
    %3 = tpu.matmul %1, %2, %cst {dimension_numbers = #tpu.dot_dimension_numbers<[1], [0], [0], [1], [0, 0, 1, 1], [], []>} : vector<16x128xbf16>, vector<128x256xbf16>, vector<16x256xf32> -> vector<16x256xf32>
    %c0_3 = arith.constant 0 : index
    %c0_4 = arith.constant 0 : index
    %4 = vector.load %arg3[%c0_3, %c0_4] : memref<1x256xf32, #tpu.memory_space<vmem>>, vector<1x256xf32>
    %5 = vector.broadcast %4 : vector<1x256xf32> to vector<16x256xf32>
    %6 = arith.addf %3, %5 : vector<16x256xf32>
    %cst_5 = arith.constant 0.000000e+00 : f32
    %7 = vector.broadcast %cst_5 : f32 to vector<16x256xf32>
    %8 = arith.maximumf %6, %7 : vector<16x256xf32>
    %9 = arith.truncf %8 : vector<16x256xf32> to vector<16x256xbf16>
    %c0_6 = arith.constant 0 : index
    %c0_7 = arith.constant 0 : index
    %10 = vector.load %arg4[%c0_6, %c0_7] : memref<256x128xbf16, #tpu.memory_space<vmem>>, vector<256x128xbf16>
    %cst_8 = arith.constant dense<0.000000e+00> : vector<16x128xf32>
    %11 = tpu.matmul %9, %10, %cst_8 {dimension_numbers = #tpu.dot_dimension_numbers<[1], [0], [0], [1], [0, 0, 1, 1], [], []>} : vector<16x256xbf16>, vector<256x128xbf16>, vector<16x128xf32> -> vector<16x128xf32>
    %c0_9 = arith.constant 0 : index
    %c0_10 = arith.constant 0 : index
    %12 = vector.load %arg5[%c0_9, %c0_10] : memref<1x128xf32, #tpu.memory_space<vmem>>, vector<1x128xf32>
    %13 = vector.broadcast %12 : vector<1x128xf32> to vector<16x128xf32>
    %14 = arith.addf %11, %13 : vector<16x128xf32>
    %cst_11 = arith.constant dense<0xFF800000> : vector<16xf32>
    %15 = vector.multi_reduction <maximumf>, %14, %cst_11 [1] : vector<16x128xf32> to vector<16xf32>
    %16 = vector.shape_cast %15 : vector<16xf32> to vector<16x1xf32>
    %17 = vector.broadcast %16 : vector<16x1xf32> to vector<16x128xf32>
    %18 = arith.subf %14, %17 : vector<16x128xf32>
    %19 = math.exp %18 : vector<16x128xf32>
    %cst_12 = arith.constant dense<0.000000e+00> : vector<16xf32>
    %20 = vector.multi_reduction <add>, %19, %cst_12 [1] : vector<16x128xf32> to vector<16xf32>
    %21 = vector.shape_cast %20 : vector<16xf32> to vector<16x1xf32>
    %22 = math.log %21 : vector<16x1xf32>
    %23 = vector.broadcast %22 : vector<16x1xf32> to vector<16x128xf32>
    %24 = arith.subf %18, %23 : vector<16x128xf32>
    %c0_13 = arith.constant 0 : index
    %c0_14 = arith.constant 0 : index
    %25 = vector.load %arg6[%c0_13, %c0_14] : memref<16x128xf32, #tpu.memory_space<vmem>>, vector<16x128xf32>
    tpu.vector_store %arg6[%c0_13, %c0_14], %24 {strides = array<i32>} : memref<16x128xf32, #tpu.memory_space<vmem>>, vector<16x128xf32>,
    return
  }
  func.func @transform_0(%arg0: i32) -> (i32, i32) {
    %c0_i32 = arith.constant 0 : i32
    %c0_i32_0 = arith.constant 0 : i32
    return %arg0, %c0_i32 : i32, i32
  }
  func.func @transform_1(%arg0: i32) -> (i32, i32) {
    %c0_i32 = arith.constant 0 : i32
    %c0_i32_0 = arith.constant 0 : i32
    %c0_i32_1 = arith.constant 0 : i32
    return %c0_i32, %c0_i32_0 : i32, i32
  }
  func.func @transform_2(%arg0: i32) -> (i32, i32) {
    %c0_i32 = arith.constant 0 : i32
    %c0_i32_0 = arith.constant 0 : i32
    %c0_i32_1 = arith.constant 0 : i32
    return %c0_i32, %c0_i32_0 : i32, i32
  }
  func.func @transform_3(%arg0: i32) -> (i32, i32) {
    %c0_i32 = arith.constant 0 : i32
    %c0_i32_0 = arith.constant 0 : i32
    %c0_i32_1 = arith.constant 0 : i32
    return %c0_i32, %c0_i32_0 : i32, i32
  }
  func.func @transform_4(%arg0: i32) -> (i32, i32) {
    %c0_i32 = arith.constant 0 : i32
    %c0_i32_0 = arith.constant 0 : i32
    %c0_i32_1 = arith.constant 0 : i32
    return %c0_i32, %c0_i32_0 : i32, i32
  }
  func.func @transform_5(%arg0: i32) -> (i32, i32) {
    %c0_i32 = arith.constant 0 : i32
    %c0_i32_0 = arith.constant 0 : i32
    return %arg0, %c0_i32 : i32, i32
  }
}

</mosaic_0001>

<llo_original>
// kernel: tpu_custom_call.1
$region0: #{tpu_custom_call.1}
  #allocation0 [shape = 'u32[]', space=smem, size = 0x4, offset = 0x4, fixed_abs, tag = 'smem constant byte address 0x4 - core index']
  #allocation1 [shape = 'u32[144,128]{1,0:T(1,128)}', space=vmem, size = 0x12000, scoped, tag = 'internal scratch']
  %s0 = inlined_call_operand.hbm [shape: f32[16,128], index: 0, kind: input, shape index: {}]
  %s1 = inlined_call_operand.hbm [shape: bf16[128,256], index: 1, kind: input, shape index: {}]
  %s2 = inlined_call_operand.vmem [shape: f32[1,256], index: 2, kind: input, shape index: {}]
  %s3 = inlined_call_operand.hbm [shape: bf16[256,128], index: 3, kind: input, shape index: {}]
  %s4 = inlined_call_operand.vmem [shape: f32[1,128], index: 4, kind: input, shape index: {}]
  %s5 = inlined_call_operand.hbm [shape: f32[16,128], index: 5, kind: output, shape index: {}]
  %s6 = sld [smem:[#allocation0]]
  $region42: #{tpu_custom_call.1} parent=0
    _
  %s8 = ssub.s32 1, %s6
  %s9 = scalar_select 0, %s8, %s6
  $region1: #{tpu_custom_call.1} parent=0
    #allocation2 [shape = 'u8[8192]{0}', space=vmem, size = 0x2000, scoped, tag = 'input window, operand 0, single buffered']
    #allocation3 [shape = 's32[1]{0}', space=sflag, size = 0x4, scoped, tag = 'scoped memory for tpu_custom_call.1']
    #allocation4 [shape = 's32[1]{0}', space=sflag, size = 0x4, scoped, tag = 'scoped memory for tpu_custom_call.1']
    #allocation5 [shape = 'u8[65536]{0}', space=vmem, size = 0x10000, scoped, tag = 'input window, operand 1, single buffered']
    #allocation6 [shape = 's32[1]{0}', space=sflag, size = 0x4, scoped, tag = 'scoped memory for tpu_custom_call.1']
    #allocation7 [shape = 'u8[65536]{0}', space=vmem, size = 0x10000, scoped, tag = 'input window, operand 3, single buffered']
    #allocation8 [shape = 'u8[8192]{0}', space=vmem, size = 0x2000, scoped, tag = 'output window, operand 0, single buffered']
    %10 = vsyncpa [#allocation3], 0
    %11 = vsyncpa [#allocation6], 0
    %12 = vsyncpa [#allocation4], 0
    // Predicated region
    $region2: #{tpu_custom_call.1} parent=1 // pred_check
      _
    $region3: #{tpu_custom_call.1} parent=1 // pred_check_branch
      %14 = sbr.rel (0) target = $region5
    $region4: #{tpu_custom_call.1} parent=1 // pred_region
      %s16 = ssub.s32 256, 256
      %17 = vsyncadd [#allocation3], %s16
      %s18 = sshll.u32 [#allocation2], 4
      %s19 = int_to_ptr.vmem [resolvable:$true] %s18
      %24 = dma.hbm_to_vmem [thread:$0]  %s0, 256, %s19, [#allocation3], 128, 128, 8
    $region5: #{tpu_custom_call.1} parent=1 // pred_fallthru
      _
    // Predicated region
    $region6: #{tpu_custom_call.1} parent=1 // pred_check
      _
    $region7: #{tpu_custom_call.1} parent=1 // pred_check_branch
      %26 = sbr.rel (0) target = $region9
    $region8: #{tpu_custom_call.1} parent=1 // pred_region
      %s28 = ssub.s32 2048, 2048
      %29 = vsyncadd [#allocation6], %s28
      %s30 = sshll.u32 [#allocation5], 4
      %s31 = int_to_ptr.vmem [resolvable:$true] %s30
      %36 = dma.hbm_to_vmem [thread:$0]  %s1, 2048, %s31, [#allocation6], 128, 128, 8
    $region9: #{tpu_custom_call.1} parent=1 // pred_fallthru
      _
    // Predicated region
    $region10: #{tpu_custom_call.1} parent=1 // pred_check
      _
    $region11: #{tpu_custom_call.1} parent=1 // pred_check_branch
      %38 = sbr.rel (0) target = $region13
    $region12: #{tpu_custom_call.1} parent=1 // pred_region
      _
    $region13: #{tpu_custom_call.1} parent=1 // pred_fallthru
      _
    // Predicated region
    $region14: #{tpu_custom_call.1} parent=1 // pred_check
      _
    $region15: #{tpu_custom_call.1} parent=1 // pred_check_branch
      %40 = sbr.rel (0) target = $region17
    $region16: #{tpu_custom_call.1} parent=1 // pred_region
      %s42 = ssub.s32 2048, 2048
      %43 = vsyncadd [#allocation6], %s42
      %s44 = sshll.u32 [#allocation7], 4
      %s45 = int_to_ptr.vmem [resolvable:$true] %s44
      %50 = dma.hbm_to_vmem [thread:$0]  %s3, 2048, %s45, [#allocation6], 64, 64, 4
    $region17: #{tpu_custom_call.1} parent=1 // pred_fallthru
      _
    // Predicated region
    $region18: #{tpu_custom_call.1} parent=1 // pred_check
      _
    $region19: #{tpu_custom_call.1} parent=1 // pred_check_branch
      %52 = sbr.rel (0) target = $region21
    $region20: #{tpu_custom_call.1} parent=1 // pred_region
      _
    $region21: #{tpu_custom_call.1} parent=1 // pred_fallthru
      _
    // Predicated region
    $region22: #{tpu_custom_call.1} parent=1 // pred_check
      _
    $region23: #{tpu_custom_call.1} parent=1 // pred_check_branch
      %54 = sbr.rel (0) target = $region25
    $region24: #{tpu_custom_call.1} parent=1 // pred_region
      %55 = dma.done [#allocation3], 256
    $region25: #{tpu_custom_call.1} parent=1 // pred_fallthru
      _
    // Predicated region
    $region26: #{tpu_custom_call.1} parent=1 // pred_check
      _
    $region27: #{tpu_custom_call.1} parent=1 // pred_check_branch
      %57 = sbr.rel (0) target = $region29
    $region28: #{tpu_custom_call.1} parent=1 // pred_region
      %58 = dma.done [#allocation6], 2048
    $region29: #{tpu_custom_call.1} parent=1 // pred_fallthru
      _
    // Predicated region
    $region30: #{tpu_custom_call.1} parent=1 // pred_check
      _
    $region31: #{tpu_custom_call.1} parent=1 // pred_check_branch
      %60 = sbr.rel (0) target = $region33
    $region32: #{tpu_custom_call.1} parent=1 // pred_region
      %61 = dma.done [#allocation6], 2048
    $region33: #{tpu_custom_call.1} parent=1 // pred_fallthru
      _
    %v63 = vld [vmem:[#allocation2] sm:$0xff]
    %v64 = vld [vmem:[#allocation2 + $0x8] sm:$0xff]
    %v65 = vpack.c.bf16 %v64, %v63
    %v66 = vld [vmem:[#allocation5] sm:$0xff]
    %v67 = vld [vmem:[#allocation5 + $0x8] sm:$0xff]
    %v68 = vld [vmem:[#allocation5 + $0x10] sm:$0xff]
    %v69 = vld [vmem:[#allocation5 + $0x18] sm:$0xff]
    %v70 = vld [vmem:[#allocation5 + $0x20] sm:$0xff]
    %v71 = vld [vmem:[#allocation5 + $0x28] sm:$0xff]
    %v72 = vld [vmem:[#allocation5 + $0x30] sm:$0xff]
    %v73 = vld [vmem:[#allocation5 + $0x38] sm:$0xff]
    %v74 = vld [vmem:[#allocation5 + $0x40] sm:$0xff]
    %v75 = vld [vmem:[#allocation5 + $0x48] sm:$0xff]
    %v76 = vld [vmem:[#allocation5 + $0x50] sm:$0xff]
    %v77 = vld [vmem:[#allocation5 + $0x58] sm:$0xff]
    %v78 = vld [vmem:[#allocation5 + $0x60] sm:$0xff]
    %v79 = vld [vmem:[#allocation5 + $0x68] sm:$0xff]
    %v80 = vld [vmem:[#allocation5 + $0x70] sm:$0xff]
    %v81 = vld [vmem:[#allocation5 + $0x78] sm:$0xff]
    %v82 = vld [vmem:[%s2] sm:$0x3]
    %v84 = vlaneseq
    %v85 = vshrl.u32 %v84, 7
    %v86 = vsub.s32 0, %v85
    %v87 = vrot.slane %v82, %v86
    %v88 = vlaneseq
    %v89 = vshrl.u32 %v88, 7
    %v90 = vsub.s32 1, %v89
    %v91 = vrot.slane %v82, %v90
    %v110 = vunpack.c.l.b16 %v66
    %v111 = vunpack.c.h.b16 %v66
    %v112 = vunpack.c.l.b16 %v67
    %v113 = vunpack.c.h.b16 %v67
    %v114 = vunpack.c.l.b16 %v68
    %v115 = vunpack.c.h.b16 %v68
    %v116 = vunpack.c.l.b16 %v69
    %v117 = vunpack.c.h.b16 %v69
    %v118 = vunpack.c.l.b16 %v70
    %v119 = vunpack.c.h.b16 %v70
    %v120 = vunpack.c.l.b16 %v71
    %v121 = vunpack.c.h.b16 %v71
    %v122 = vunpack.c.l.b16 %v72
    %v123 = vunpack.c.h.b16 %v72
    %v124 = vunpack.c.l.b16 %v73
    %v125 = vunpack.c.h.b16 %v73
    %v126 = vunpack.c.l.b16 %v74
    %v127 = vunpack.c.h.b16 %v74
    %v128 = vunpack.c.l.b16 %v75
    %v129 = vunpack.c.h.b16 %v75
    %v130 = vunpack.c.l.b16 %v76
    %v131 = vunpack.c.h.b16 %v76
    %v132 = vunpack.c.l.b16 %v77
    %v133 = vunpack.c.h.b16 %v77
    %v134 = vunpack.c.l.b16 %v78
    %v135 = vunpack.c.h.b16 %v78
    %v136 = vunpack.c.l.b16 %v79
    %v137 = vunpack.c.h.b16 %v79
    %v138 = vunpack.c.l.b16 %v80
    %v139 = vunpack.c.h.b16 %v80
    %v140 = vunpack.c.l.b16 %v81
    %v141 = vunpack.c.h.b16 %v81
    %v142 = vpack.c.b16 %v112, %v110
    %v143 = vpack.c.b16 %v113, %v111
    %v144 = vpack.c.b16 %v116, %v114
    %v145 = vpack.c.b16 %v117, %v115
    %v146 = vpack.c.b16 %v120, %v118
    %v147 = vpack.c.b16 %v121, %v119
    %v148 = vpack.c.b16 %v124, %v122
    %v149 = vpack.c.b16 %v125, %v123
    %v150 = vpack.c.b16 %v128, %v126
    %v151 = vpack.c.b16 %v129, %v127
    %v152 = vpack.c.b16 %v132, %v130
    %v153 = vpack.c.b16 %v133, %v131
    %v154 = vpack.c.b16 %v136, %v134
    %v155 = vpack.c.b16 %v137, %v135
    %v156 = vpack.c.b16 %v140, %v138
    %v157 = vpack.c.b16 %v141, %v139
    %174 = vmatprep.subr.bf16.mxu0 %v143
    %175 = vmatpush1.bf16.msra.mxu0 %v142
    %176 = vmatprep.subr.bf16.mxu0 %v145
    %177 = vmatpush1.bf16.msra.mxu0 %v144
    %178 = vmatprep.subr.bf16.mxu0 %v147
    %179 = vmatpush1.bf16.msra.mxu0 %v146
    %180 = vmatprep.subr.bf16.mxu0 %v149
    %181 = vmatpush1.bf16.msra.mxu0 %v148
    %182 = vmatprep.subr.bf16.mxu0 %v151
    %183 = vmatpush1.bf16.msra.mxu0 %v150
    %184 = vmatprep.subr.bf16.mxu0 %v153
    %185 = vmatpush1.bf16.msra.mxu0 %v152
    %186 = vmatprep.subr.bf16.mxu0 %v155
    %187 = vmatpush1.bf16.msra.mxu0 %v154
    %188 = vmatprep.subr.bf16.mxu0 %v157
    %189 = vmatpush1.bf16.msra.mxu0 %v156
    %190 = vmatprep.subr.bf16.mxu0 0
    %191 = vmatpush1.bf16.msra.mxu0 0
    %192 = vmatprep.subr.bf16.mxu0 0
    %193 = vmatpush1.bf16.msra.mxu0 0
    %194 = vmatprep.subr.bf16.mxu0 0
    %195 = vmatpush1.bf16.msra.mxu0 0
    %196 = vmatprep.subr.bf16.mxu0 0
    %197 = vmatpush1.bf16.msra.mxu0 0
    %198 = vmatprep.subr.bf16.mxu0 0
    %199 = vmatpush1.bf16.msra.mxu0 0
    %200 = vmatprep.subr.bf16.mxu0 0
    %201 = vmatpush1.bf16.msra.mxu0 0
    %202 = vmatprep.subr.bf16.mxu0 0
    %203 = vmatpush1.bf16.msra.mxu0 0
    %204 = vmatprep.subr.bf16.mxu0 0
    %205 = vmatpush1.bf16.msra.mxu0 0
    %206 = vmatprep.mubr.bf16.mxu0 0
    %207 = vmatmul.mubr.bf16.gmra.mrb[0].mxu0 %v65
    %v208 = vpop.f32.mrb[0].mxu0
    %v209 = vadd.f32 %v87, %v208
    %v210 = vpop.f32.mrb[0].mxu0
    %v211 = vadd.f32 %v91, %v210
    %v212 = vpop.f32.mrb[0].mxu0
    %v213 = vadd.f32 %v87, %v212
    %v214 = vpop.f32.mrb[0].mxu0
    %v215 = vadd.f32 %v91, %v214
    %216 = vdwg.mxu0
    %v217 = vmax.f32 %v209, 0.0
    %v218 = vmax.f32 %v211, 0.0
    %v219 = vmax.f32 %v213, 0.0
    %v220 = vmax.f32 %v215, 0.0
    %v221 = vpack.c.bf16 %v219, %v217
    %v222 = vpack.c.bf16 %v220, %v218
    %v223 = vld [vmem:[#allocation7] sm:$0xf]
    %v224 = vld [vmem:[#allocation7 + $0x4] sm:$0xf]
    %v225 = vld [vmem:[#allocation7 + $0x8] sm:$0xf]
    %v226 = vld [vmem:[#allocation7 + $0xc] sm:$0xf]
    %v227 = vld [vmem:[#allocation7 + $0x10] sm:$0xf]
    %v228 = vld [vmem:[#allocation7 + $0x14] sm:$0xf]
    %v229 = vld [vmem:[#allocation7 + $0x18] sm:$0xf]
    %v230 = vld [vmem:[#allocation7 + $0x1c] sm:$0xf]
    %v231 = vld [vmem:[#allocation7 + $0x20] sm:$0xf]
    %v232 = vld [vmem:[#allocation7 + $0x24] sm:$0xf]
    %v233 = vld [vmem:[#allocation7 + $0x28] sm:$0xf]
    %v234 = vld [vmem:[#allocation7 + $0x2c] sm:$0xf]
    %v235 = vld [vmem:[#allocation7 + $0x30] sm:$0xf]
    %v236 = vld [vmem:[#allocation7 + $0x34] sm:$0xf]
    %v237 = vld [vmem:[#allocation7 + $0x38] sm:$0xf]
    %v238 = vld [vmem:[#allocation7 + $0x3c] sm:$0xf]
    %v239 = vld [vmem:[#allocation7 + $0x40] sm:$0xf]
    %v240 = vld [vmem:[#allocation7 + $0x44] sm:$0xf]
    %v241 = vld [vmem:[#allocation7 + $0x48] sm:$0xf]
    %v242 = vld [vmem:[#allocation7 + $0x4c] sm:$0xf]
    %v243 = vld [vmem:[#allocation7 + $0x50] sm:$0xf]
    %v244 = vld [vmem:[#allocation7 + $0x54] sm:$0xf]
    %v245 = vld [vmem:[#allocation7 + $0x58] sm:$0xf]
    %v246 = vld [vmem:[#allocation7 + $0x5c] sm:$0xf]
    %v247 = vld [vmem:[#allocation7 + $0x60] sm:$0xf]
    %v248 = vld [vmem:[#allocation7 + $0x64] sm:$0xf]
    %v249 = vld [vmem:[#allocation7 + $0x68] sm:$0xf]
    %v250 = vld [vmem:[#allocation7 + $0x6c] sm:$0xf]
    %v251 = vld [vmem:[#allocation7 + $0x70] sm:$0xf]
    %v252 = vld [vmem:[#allocation7 + $0x74] sm:$0xf]
    %v253 = vld [vmem:[#allocation7 + $0x78] sm:$0xf]
    %v254 = vld [vmem:[#allocation7 + $0x7c] sm:$0xf]
    %v255 = vld [vmem:[%s4] sm:$0x1]
    %v257 = vlaneseq
    %v258 = vshrl.u32 %v257, 7
    %v259 = vsub.s32 0, %v258
    %v260 = vrot.slane %v255, %v259
    %v294 = vunpack.c.l.b16 %v223
    %v295 = vunpack.c.l.b16 %v224
    %v296 = vunpack.c.l.b16 %v225
    %v297 = vunpack.c.l.b16 %v226
    %v298 = vunpack.c.l.b16 %v227
    %v299 = vunpack.c.l.b16 %v228
    %v300 = vunpack.c.l.b16 %v229
    %v301 = vunpack.c.l.b16 %v230
    %v302 = vunpack.c.l.b16 %v231
    %v303 = vunpack.c.l.b16 %v232
    %v304 = vunpack.c.l.b16 %v233
    %v305 = vunpack.c.l.b16 %v234
    %v306 = vunpack.c.l.b16 %v235
    %v307 = vunpack.c.l.b16 %v236
    %v308 = vunpack.c.l.b16 %v237
    %v309 = vunpack.c.l.b16 %v238
    %v310 = vunpack.c.l.b16 %v239
    %v311 = vunpack.c.l.b16 %v240
    %v312 = vunpack.c.l.b16 %v241
    %v313 = vunpack.c.l.b16 %v242
    %v314 = vunpack.c.l.b16 %v243
    %v315 = vunpack.c.l.b16 %v244
    %v316 = vunpack.c.l.b16 %v245
    %v317 = vunpack.c.l.b16 %v246
    %v318 = vunpack.c.l.b16 %v247
    %v319 = vunpack.c.l.b16 %v248
    %v320 = vunpack.c.l.b16 %v249
    %v321 = vunpack.c.l.b16 %v250
    %v322 = vunpack.c.l.b16 %v251
    %v323 = vunpack.c.l.b16 %v252
    %v324 = vunpack.c.l.b16 %v253
    %v325 = vunpack.c.l.b16 %v254
    %v326 = vpack.c.b16 %v295, %v294
    %v327 = vpack.c.b16 %v297, %v296
    %v328 = vpack.c.b16 %v299, %v298
    %v329 = vpack.c.b16 %v301, %v300
    %v330 = vpack.c.b16 %v303, %v302
    %v331 = vpack.c.b16 %v305, %v304
    %v332 = vpack.c.b16 %v307, %v306
    %v333 = vpack.c.b16 %v309, %v308
    %v334 = vpack.c.b16 %v311, %v310
    %v335 = vpack.c.b16 %v313, %v312
    %v336 = vpack.c.b16 %v315, %v314
    %v337 = vpack.c.b16 %v317, %v316
    %v338 = vpack.c.b16 %v319, %v318
    %v339 = vpack.c.b16 %v321, %v320
    %v340 = vpack.c.b16 %v323, %v322
    %v341 = vpack.c.b16 %v325, %v324
    %358 = vmatprep.subr.bf16.mxu0 0
    %359 = vmatpush1.bf16.msra.mxu0 %v326
    %360 = vmatprep.subr.bf16.mxu0 0
    %361 = vmatpush1.bf16.msra.mxu0 %v327
    %362 = vmatprep.subr.bf16.mxu0 0
    %363 = vmatpush1.bf16.msra.mxu0 %v328
    %364 = vmatprep.subr.bf16.mxu0 0
    %365 = vmatpush1.bf16.msra.mxu0 %v329
    %366 = vmatprep.subr.bf16.mxu0 0
    %367 = vmatpush1.bf16.msra.mxu0 %v330
    %368 = vmatprep.subr.bf16.mxu0 0
    %369 = vmatpush1.bf16.msra.mxu0 %v331
    %370 = vmatprep.subr.bf16.mxu0 0
    %371 = vmatpush1.bf16.msra.mxu0 %v332
    %372 = vmatprep.subr.bf16.mxu0 0
    %373 = vmatpush1.bf16.msra.mxu0 %v333
    %374 = vmatprep.subr.bf16.mxu0 0
    %375 = vmatpush1.bf16.msra.mxu0 %v334
    %376 = vmatprep.subr.bf16.mxu0 0
    %377 = vmatpush1.bf16.msra.mxu0 %v335
    %378 = vmatprep.subr.bf16.mxu0 0
    %379 = vmatpush1.bf16.msra.mxu0 %v336
    %380 = vmatprep.subr.bf16.mxu0 0
    %381 = vmatpush1.bf16.msra.mxu0 %v337
    %382 = vmatprep.subr.bf16.mxu0 0
    %383 = vmatpush1.bf16.msra.mxu0 %v338
    %384 = vmatprep.subr.bf16.mxu0 0
    %385 = vmatpush1.bf16.msra.mxu0 %v339
    %386 = vmatprep.subr.bf16.mxu0 0
    %387 = vmatpush1.bf16.msra.mxu0 %v340
    %388 = vmatprep.subr.bf16.mxu0 0
    %389 = vmatpush1.bf16.msra.mxu0 %v341
    %390 = vmatprep.mubr.bf16.mxu0 %v222
    %391 = vmatmul.mubr.bf16.gmra.mrb[0].mxu0 %v221
    %v392 = vpop.f32.mrb[0].mxu0
    %v393 = vadd.f32 %v260, %v392
    %v394 = vpop.f32.mrb[0].mxu0
    %v395 = vpop.f32.mrb[0].mxu0
    %v396 = vadd.f32 %v260, %v395
    %v397 = vpop.f32.mrb[0].mxu0
    %398 = vdwg.mxu0
    %399 = vmax.xlane.f32.xlu0 %v393
    %v400 = vpop.xlane.xlu0 %399
    %401 = vmax.xlane.f32.xlu0 %v396
    %v402 = vpop.xlane.xlu0 %401
    %v403 = vsub.f32 %v393, %v400
    %v404 = vsub.f32 %v396, %v402
    %v405 = vmul.f32 %v403, 1.442695
    %v406 = vpow.pop %v405
    %v407 = vmul.f32 %v404, 1.442695
    %v408 = vpow.pop %v407
    %409 = vadd.xlane.f32.xlu0 %v406
    %v410 = vpop.xlane.xlu0 %409
    %411 = vadd.xlane.f32.xlu0 %v408
    %v412 = vpop.xlane.xlu0 %411
    %v413 = vlog2.pop %v410
    %v414 = vmul.f32 %v413, 0.6931472
    %v415 = vlog2.pop %v412
    %v416 = vmul.f32 %v415, 0.6931472
    %v417 = vsub.f32 %v403, %v414
    %v418 = vsub.f32 %v404, %v416
    %419 = vst [vmem:[#allocation8] sm:$0xff] %v417
    %420 = vst [vmem:[#allocation8 + $0x8] sm:$0xff] %v418
    // Predicated region
    $region34: #{tpu_custom_call.1} parent=1 // pred_check
      _
    $region35: #{tpu_custom_call.1} parent=1 // pred_check_branch
      %422 = sbr.rel (0) target = $region37
    $region36: #{tpu_custom_call.1} parent=1 // pred_region
      %s424 = ssub.s32 256, 256
      %425 = vsyncadd [#allocation4], %s424
      %s426 = sshll.u32 [#allocation8], 4
      %s427 = int_to_ptr.vmem [resolvable:$true] %s426
      %432 = dma.vmem_to_hbm [thread:$0]  %s427, 256, %s5, [#allocation4], 128, 128, 8
    $region37: #{tpu_custom_call.1} parent=1 // pred_fallthru
      _
    // Predicated region
    $region38: #{tpu_custom_call.1} parent=1 // pred_check
      _
    $region39: #{tpu_custom_call.1} parent=1 // pred_check_branch
      %434 = sbr.rel (0) target = $region41
    $region40: #{tpu_custom_call.1} parent=1 // pred_region
      %435 = dma.done [#allocation4], 256
    $region41: #{tpu_custom_call.1} parent=1 // pred_fallthru
      _
    %436 = vsyncpa [#allocation3], 1
    %437 = vsyncpa [#allocation6], 1
    %438 = vsyncpa [#allocation4], 1

</llo_original>
